<compile_context>
chip_gen: v6e
topology: v6e:2x2x1
jax: 0.10.0
libtpu: 0.0.40
codegen_flags: <defaults>
</compile_context>

<pallas_src>
import jax
import jax.numpy as jnp
from jax import lax
from jax.experimental import pallas as pl
from jax.experimental.pallas import tpu as pltpu

K = 5        # conv kernel size (nn.Conv2d(1, 1, kernel_size=5))
STRIP = 512  # in-kernel lane-strip size (multiple of 128)


def _make_conv_kernel(h, w, oh, ow, bn):
    hw = h * w
    ohw = oh * w                  # flat output length incl. (w-ow) pad cols/row
    l_out = (oh - 1) * w + ow     # flat outputs whose taps stay in-bounds
    pad = ohw - l_out             # == K - 1 == 4 trailing lanes (trimmed outside)

    def strip(w_ref, b_ref, x_ref, o_ref, j0, tj):
        # out_flat[:, j] = sum_{kh,kw} W[kh,kw] * x_flat[:, j + kh*w + kw] + b
        # 5 independent per-kh accumulator chains -> the 4 VALU slots co-issue.
        accs = []
        for kh in range(K):
            a = None
            for kw in range(K):
                tap = w_ref[kh * K + kw] * x_ref[:, pl.ds(j0 + kh * w + kw, tj)]
                a = tap if a is None else a + tap
            accs.append(a)
        out = ((accs[0] + accs[1]) + (accs[2] + accs[3])) + accs[4] + b_ref[0]
        o_ref[:, pl.ds(j0, tj)] = out.astype(o_ref.dtype)

    def kernel(w_ref, b_ref, x_ref, o_ref):
        n_full = l_out // STRIP
        rem = l_out % STRIP
        if 0 < n_full <= 8:
            # Few strips: fully unrolled, purely static addressing.
            for i in range(n_full):
                strip(w_ref, b_ref, x_ref, o_ref, i * STRIP, STRIP)
        elif n_full > 8:
            # Many strips (large images): rolled loop, 128-aligned dynamic starts.
            def body(i, carry):
                strip(w_ref, b_ref, x_ref, o_ref,
                      pl.multiple_of(i * STRIP, 128), STRIP)
                return carry
            lax.fori_loop(0, n_full, body, 0, unroll=False)
        if rem > 0:
            strip(w_ref, b_ref, x_ref, o_ref, n_full * STRIP, rem)
        # The trailing `pad` lanes would need out-of-bounds taps; they are
        # trimmed by the wrapper, so just store zeros there.
        o_ref[:, l_out:ohw] = jnp.zeros((o_ref.shape[0], pad), o_ref.dtype)

    return kernel


def conv2d_1x1ch_k5(x_nchw, weight, bias):
    """x_nchw: (N, 1, H, W); weight: (1, 1, 5, 5); bias: (1,). Returns (N, 1, OH, OW) f32."""
    n, c, h, w = x_nchw.shape
    assert c == 1 and weight.shape == (1, 1, K, K) and bias.shape == (1,)
    assert h >= K and w >= K
    oh, ow = h - K + 1, w - K + 1
    hw, ohw = h * w, oh * w

    # NCHW consumed directly: (N, 1, H, W) -> (N, H*W) is a free contiguous
    # reshape -- no transpose, no extra HBM round trip.
    x_flat = x_nchw.reshape(n, hw).astype(jnp.float32)
    w_flat = weight.reshape(K * K).astype(jnp.float32)
    b1 = bias.astype(jnp.float32)

    # Batch on the sublane axis in tiles of 8; lanes come from the flattened
    # image, so lane occupancy is independent of N.
    # NOTE(v7x): with N <= 8 this is a single grid step, so the second
    # TensorCore idles; halving bn (or adding a "parallel" lane-strip grid axis)
    # would populate both cores for large images.
    bn = n if n <= 8 else 8
    grid = (pl.cdiv(n, bn),)

    # TODO(synk): for images whose (bn, H*W) f32 slab does not fit VMEM
    # (H*W >~ 1M elements), switch to a manual double-buffered row-halo DMA
    # (memory_space=pl.ANY + make_async_copy of (strip_oh + 4, W) windows).
    in_blk = bn * hw * 4
    out_blk = bn * ohw * 4
    try:
        vmem_cap = int(pltpu.get_tpu_info().vmem_capacity_bytes)
    except Exception:
        vmem_cap = 64 << 20   # conservative: v7x per-TC VMEM
    need = 4 * (in_blk + out_blk) + (4 << 20)   # double-buffered blocks + headroom
    vmem_limit = int(max(8 << 20, min(need, vmem_cap // 2)))

    kernel = _make_conv_kernel(h, w, oh, ow, bn)
    out_flat = pl.pallas_call(
        kernel,
        out_shape=jax.ShapeDtypeStruct((n, ohw), jnp.float32),
        grid=grid,
        in_specs=[
            pl.BlockSpec(memory_space=pltpu.SMEM),               # (25,) weights
            pl.BlockSpec(memory_space=pltpu.SMEM),               # (1,) bias
            pl.BlockSpec((bn, hw), lambda i: (i, 0)),            # flat input slab
        ],
        out_specs=pl.BlockSpec((bn, ohw), lambda i: (i, 0)),     # flat output slab
        compiler_params=pltpu.CompilerParams(
            dimension_semantics=("parallel",),
            vmem_limit_bytes=vmem_limit),
    )(w_flat, b1, x_flat)

    # (N, OH*W) -> (N, OH, W) is a free reshape; trimming the K-1 pad columns is
    # a cheap slice of the small output (no transpose anywhere).
    return out_flat.reshape(n, oh, w)[:, :, :ow].reshape(n, 1, oh, ow)


if __name__ == "__main__":
    key = jax.random.PRNGKey(0)
    kx, kwt, kb = jax.random.split(key, 3)

    # Deterministic parameter init (shapes from nn.Conv2d(1, 1, kernel_size=5)).
    fan_in = 1 * K * K
    bound = 1.0 / (fan_in ** 0.5)
    weight = jax.random.uniform(kwt, (1, 1, K, K), jnp.float32, -bound, bound)
    bias = jax.random.uniform(kb, (1,), jnp.float32, -bound, bound)

    # Small NCHW input consistent with the module (single input channel).
    x = jax.random.normal(kx, (2, 1, 16, 16), jnp.float32)

    conv = jax.jit(conv2d_1x1ch_k5)
    y = jax.block_until_ready(conv(x, weight, bias))

    # Reference: XLA's conv (PyTorch-equivalent valid cross-correlation + bias).
    y_ref = jax.lax.conv_general_dilated(
        x, weight, window_strides=(1, 1), padding="VALID",
        dimension_numbers=("NCHW", "OIHW", "NCHW")) + bias.reshape(1, 1, 1, 1)
    assert y.shape == (2, 1, 12, 12)
    assert jnp.allclose(y, y_ref, atol=1e-5, rtol=1e-5)

    print("KERNEL_OK")
</pallas_src>

<mosaic_0001>
module attributes {stable_mosaic.version = 11 : i64} {
  func.func @kernel(%arg0: i32, %arg1: memref<25xf32, #tpu.memory_space<smem>>, %arg2: memref<1xf32, #tpu.memory_space<smem>>, %arg3: memref<2x256xf32, #tpu.memory_space<vmem>>, %arg4: memref<2x192xf32, #tpu.memory_space<vmem>>) attributes {dimension_semantics = [#tpu.dimension_semantics<parallel>], iteration_bounds = array<i64: 1>, scalar_prefetch = 0 : i64, scratch_operands = 0 : i64, tpu.core_type = #tpu.core_type<tc>, window_params = [{transform_indices = @transform_0, window_bounds = array<i64: 25>}, {transform_indices = @transform_1, window_bounds = array<i64: 1>}, {transform_indices = @transform_2, window_bounds = array<i64: 2, 256>}, {transform_indices = @transform_3, window_bounds = array<i64: 2, 192>}]} {
    %c0 = arith.constant 0 : index
    %0 = memref.load %arg1[%c0] : memref<25xf32, #tpu.memory_space<smem>>
    %c0_0 = arith.constant 0 : index
    %c0_1 = arith.constant 0 : index
    %1 = vector.load %arg3[%c0_0, %c0_1] : memref<2x256xf32, #tpu.memory_space<vmem>>, vector<2x188xf32>
    %2 = vector.broadcast %0 : f32 to vector<2x188xf32>
    %3 = arith.mulf %2, %1 : vector<2x188xf32>
    %c1 = arith.constant 1 : index
    %4 = memref.load %arg1[%c1] : memref<25xf32, #tpu.memory_space<smem>>
    %c0_2 = arith.constant 0 : index
    %c1_3 = arith.constant 1 : index
    %5 = vector.load %arg3[%c0_2, %c1_3] : memref<2x256xf32, #tpu.memory_space<vmem>>, vector<2x188xf32>
    %6 = vector.broadcast %4 : f32 to vector<2x188xf32>
    %7 = arith.mulf %6, %5 : vector<2x188xf32>
    %8 = arith.addf %3, %7 : vector<2x188xf32>
    %c2 = arith.constant 2 : index
    %9 = memref.load %arg1[%c2] : memref<25xf32, #tpu.memory_space<smem>>
    %c0_4 = arith.constant 0 : index
    %c2_5 = arith.constant 2 : index
    %10 = vector.load %arg3[%c0_4, %c2_5] : memref<2x256xf32, #tpu.memory_space<vmem>>, vector<2x188xf32>
    %11 = vector.broadcast %9 : f32 to vector<2x188xf32>
    %12 = arith.mulf %11, %10 : vector<2x188xf32>
    %13 = arith.addf %8, %12 : vector<2x188xf32>
    %c3 = arith.constant 3 : index
    %14 = memref.load %arg1[%c3] : memref<25xf32, #tpu.memory_space<smem>>
    %c0_6 = arith.constant 0 : index
    %c3_7 = arith.constant 3 : index
    %15 = vector.load %arg3[%c0_6, %c3_7] : memref<2x256xf32, #tpu.memory_space<vmem>>, vector<2x188xf32>
    %16 = vector.broadcast %14 : f32 to vector<2x188xf32>
    %17 = arith.mulf %16, %15 : vector<2x188xf32>
    %18 = arith.addf %13, %17 : vector<2x188xf32>
    %c4 = arith.constant 4 : index
    %19 = memref.load %arg1[%c4] : memref<25xf32, #tpu.memory_space<smem>>
    %c0_8 = arith.constant 0 : index
    %c4_9 = arith.constant 4 : index
    %20 = vector.load %arg3[%c0_8, %c4_9] : memref<2x256xf32, #tpu.memory_space<vmem>>, vector<2x188xf32>
    %21 = vector.broadcast %19 : f32 to vector<2x188xf32>
    %22 = arith.mulf %21, %20 : vector<2x188xf32>
    %23 = arith.addf %18, %22 : vector<2x188xf32>
    %c5 = arith.constant 5 : index
    %24 = memref.load %arg1[%c5] : memref<25xf32, #tpu.memory_space<smem>>
    %c0_10 = arith.constant 0 : index
    %c16 = arith.constant 16 : index
    %25 = vector.load %arg3[%c0_10, %c16] : memref<2x256xf32, #tpu.memory_space<vmem>>, vector<2x188xf32>
    %26 = vector.broadcast %24 : f32 to vector<2x188xf32>
    %27 = arith.mulf %26, %25 : vector<2x188xf32>
    %c6 = arith.constant 6 : index
    %28 = memref.load %arg1[%c6] : memref<25xf32, #tpu.memory_space<smem>>
    %c0_11 = arith.constant 0 : index
    %c17 = arith.constant 17 : index
    %29 = vector.load %arg3[%c0_11, %c17] : memref<2x256xf32, #tpu.memory_space<vmem>>, vector<2x188xf32>
    %30 = vector.broadcast %28 : f32 to vector<2x188xf32>
    %31 = arith.mulf %30, %29 : vector<2x188xf32>
    %32 = arith.addf %27, %31 : vector<2x188xf32>
    %c7 = arith.constant 7 : index
    %33 = memref.load %arg1[%c7] : memref<25xf32, #tpu.memory_space<smem>>
    %c0_12 = arith.constant 0 : index
    %c18 = arith.constant 18 : index
    %34 = vector.load %arg3[%c0_12, %c18] : memref<2x256xf32, #tpu.memory_space<vmem>>, vector<2x188xf32>
    %35 = vector.broadcast %33 : f32 to vector<2x188xf32>
    %36 = arith.mulf %35, %34 : vector<2x188xf32>
    %37 = arith.addf %32, %36 : vector<2x188xf32>
    %c8 = arith.constant 8 : index
    %38 = memref.load %arg1[%c8] : memref<25xf32, #tpu.memory_space<smem>>
    %c0_13 = arith.constant 0 : index
    %c19 = arith.constant 19 : index
    %39 = vector.load %arg3[%c0_13, %c19] : memref<2x256xf32, #tpu.memory_space<vmem>>, vector<2x188xf32>
    %40 = vector.broadcast %38 : f32 to vector<2x188xf32>
    %41 = arith.mulf %40, %39 : vector<2x188xf32>
    %42 = arith.addf %37, %41 : vector<2x188xf32>
    %c9 = arith.constant 9 : index
    %43 = memref.load %arg1[%c9] : memref<25xf32, #tpu.memory_space<smem>>
    %c0_14 = arith.constant 0 : index
    %c20 = arith.constant 20 : index
    %44 = vector.load %arg3[%c0_14, %c20] : memref<2x256xf32, #tpu.memory_space<vmem>>, vector<2x188xf32>
    %45 = vector.broadcast %43 : f32 to vector<2x188xf32>
    %46 = arith.mulf %45, %44 : vector<2x188xf32>
    %47 = arith.addf %42, %46 : vector<2x188xf32>
    %c10 = arith.constant 10 : index
    %48 = memref.load %arg1[%c10] : memref<25xf32, #tpu.memory_space<smem>>
    %c0_15 = arith.constant 0 : index
    %c32 = arith.constant 32 : index
    %49 = vector.load %arg3[%c0_15, %c32] : memref<2x256xf32, #tpu.memory_space<vmem>>, vector<2x188xf32>
    %50 = vector.broadcast %48 : f32 to vector<2x188xf32>
    %51 = arith.mulf %50, %49 : vector<2x188xf32>
    %c11 = arith.constant 11 : index
    %52 = memref.load %arg1[%c11] : memref<25xf32, #tpu.memory_space<smem>>
    %c0_16 = arith.constant 0 : index
    %c33 = arith.constant 33 : index
    %53 = vector.load %arg3[%c0_16, %c33] : memref<2x256xf32, #tpu.memory_space<vmem>>, vector<2x188xf32>
    %54 = vector.broadcast %52 : f32 to vector<2x188xf32>
    %55 = arith.mulf %54, %53 : vector<2x188xf32>
    %56 = arith.addf %51, %55 : vector<2x188xf32>
    %c12 = arith.constant 12 : index
    %57 = memref.load %arg1[%c12] : memref<25xf32, #tpu.memory_space<smem>>
    %c0_17 = arith.constant 0 : index
    %c34 = arith.constant 34 : index
    %58 = vector.load %arg3[%c0_17, %c34] : memref<2x256xf32, #tpu.memory_space<vmem>>, vector<2x188xf32>
    %59 = vector.broadcast %57 : f32 to vector<2x188xf32>
    %60 = arith.mulf %59, %58 : vector<2x188xf32>
    %61 = arith.addf %56, %60 : vector<2x188xf32>
    %c13 = arith.constant 13 : index
    %62 = memref.load %arg1[%c13] : memref<25xf32, #tpu.memory_space<smem>>
    %c0_18 = arith.constant 0 : index
    %c35 = arith.constant 35 : index
    %63 = vector.load %arg3[%c0_18, %c35] : memref<2x256xf32, #tpu.memory_space<vmem>>, vector<2x188xf32>
    %64 = vector.broadcast %62 : f32 to vector<2x188xf32>
    %65 = arith.mulf %64, %63 : vector<2x188xf32>
    %66 = arith.addf %61, %65 : vector<2x188xf32>
    %c14 = arith.constant 14 : index
    %67 = memref.load %arg1[%c14] : memref<25xf32, #tpu.memory_space<smem>>
    %c0_19 = arith.constant 0 : index
    %c36 = arith.constant 36 : index
    %68 = vector.load %arg3[%c0_19, %c36] : memref<2x256xf32, #tpu.memory_space<vmem>>, vector<2x188xf32>
    %69 = vector.broadcast %67 : f32 to vector<2x188xf32>
    %70 = arith.mulf %69, %68 : vector<2x188xf32>
    %71 = arith.addf %66, %70 : vector<2x188xf32>
    %c15 = arith.constant 15 : index
    %72 = memref.load %arg1[%c15] : memref<25xf32, #tpu.memory_space<smem>>
    %c0_20 = arith.constant 0 : index
    %c48 = arith.constant 48 : index
    %73 = vector.load %arg3[%c0_20, %c48] : memref<2x256xf32, #tpu.memory_space<vmem>>, vector<2x188xf32>
    %74 = vector.broadcast %72 : f32 to vector<2x188xf32>
    %75 = arith.mulf %74, %73 : vector<2x188xf32>
    %c16_21 = arith.constant 16 : index
    %76 = memref.load %arg1[%c16_21] : memref<25xf32, #tpu.memory_space<smem>>
    %c0_22 = arith.constant 0 : index
    %c49 = arith.constant 49 : index
    %77 = vector.load %arg3[%c0_22, %c49] : memref<2x256xf32, #tpu.memory_space<vmem>>, vector<2x188xf32>
    %78 = vector.broadcast %76 : f32 to vector<2x188xf32>
    %79 = arith.mulf %78, %77 : vector<2x188xf32>
    %80 = arith.addf %75, %79 : vector<2x188xf32>
    %c17_23 = arith.constant 17 : index
    %81 = memref.load %arg1[%c17_23] : memref<25xf32, #tpu.memory_space<smem>>
    %c0_24 = arith.constant 0 : index
    %c50 = arith.constant 50 : index
    %82 = vector.load %arg3[%c0_24, %c50] : memref<2x256xf32, #tpu.memory_space<vmem>>, vector<2x188xf32>
    %83 = vector.broadcast %81 : f32 to vector<2x188xf32>
    %84 = arith.mulf %83, %82 : vector<2x188xf32>
    %85 = arith.addf %80, %84 : vector<2x188xf32>
    %c18_25 = arith.constant 18 : index
    %86 = memref.load %arg1[%c18_25] : memref<25xf32, #tpu.memory_space<smem>>
    %c0_26 = arith.constant 0 : index
    %c51 = arith.constant 51 : index
    %87 = vector.load %arg3[%c0_26, %c51] : memref<2x256xf32, #tpu.memory_space<vmem>>, vector<2x188xf32>
    %88 = vector.broadcast %86 : f32 to vector<2x188xf32>
    %89 = arith.mulf %88, %87 : vector<2x188xf32>
    %90 = arith.addf %85, %89 : vector<2x188xf32>
    %c19_27 = arith.constant 19 : index
    %91 = memref.load %arg1[%c19_27] : memref<25xf32, #tpu.memory_space<smem>>
    %c0_28 = arith.constant 0 : index
    %c52 = arith.constant 52 : index
    %92 = vector.load %arg3[%c0_28, %c52] : memref<2x256xf32, #tpu.memory_space<vmem>>, vector<2x188xf32>
    %93 = vector.broadcast %91 : f32 to vector<2x188xf32>
    %94 = arith.mulf %93, %92 : vector<2x188xf32>
    %95 = arith.addf %90, %94 : vector<2x188xf32>
    %c20_29 = arith.constant 20 : index
    %96 = memref.load %arg1[%c20_29] : memref<25xf32, #tpu.memory_space<smem>>
    %c0_30 = arith.constant 0 : index
    %c64 = arith.constant 64 : index
    %97 = vector.load %arg3[%c0_30, %c64] : memref<2x256xf32, #tpu.memory_space<vmem>>, vector<2x188xf32>
    %98 = vector.broadcast %96 : f32 to vector<2x188xf32>
    %99 = arith.mulf %98, %97 : vector<2x188xf32>
    %c21 = arith.constant 21 : index
    %100 = memref.load %arg1[%c21] : memref<25xf32, #tpu.memory_space<smem>>
    %c0_31 = arith.constant 0 : index
    %c65 = arith.constant 65 : index
    %101 = vector.load %arg3[%c0_31, %c65] : memref<2x256xf32, #tpu.memory_space<vmem>>, vector<2x188xf32>
    %102 = vector.broadcast %100 : f32 to vector<2x188xf32>
    %103 = arith.mulf %102, %101 : vector<2x188xf32>
    %104 = arith.addf %99, %103 : vector<2x188xf32>
    %c22 = arith.constant 22 : index
    %105 = memref.load %arg1[%c22] : memref<25xf32, #tpu.memory_space<smem>>
    %c0_32 = arith.constant 0 : index
    %c66 = arith.constant 66 : index
    %106 = vector.load %arg3[%c0_32, %c66] : memref<2x256xf32, #tpu.memory_space<vmem>>, vector<2x188xf32>
    %107 = vector.broadcast %105 : f32 to vector<2x188xf32>
    %108 = arith.mulf %107, %106 : vector<2x188xf32>
    %109 = arith.addf %104, %108 : vector<2x188xf32>
    %c23 = arith.constant 23 : index
    %110 = memref.load %arg1[%c23] : memref<25xf32, #tpu.memory_space<smem>>
    %c0_33 = arith.constant 0 : index
    %c67 = arith.constant 67 : index
    %111 = vector.load %arg3[%c0_33, %c67] : memref<2x256xf32, #tpu.memory_space<vmem>>, vector<2x188xf32>
    %112 = vector.broadcast %110 : f32 to vector<2x188xf32>
    %113 = arith.mulf %112, %111 : vector<2x188xf32>
    %114 = arith.addf %109, %113 : vector<2x188xf32>
    %c24 = arith.constant 24 : index
    %115 = memref.load %arg1[%c24] : memref<25xf32, #tpu.memory_space<smem>>
    %c0_34 = arith.constant 0 : index
    %c68 = arith.constant 68 : index
    %116 = vector.load %arg3[%c0_34, %c68] : memref<2x256xf32, #tpu.memory_space<vmem>>, vector<2x188xf32>
    %117 = vector.broadcast %115 : f32 to vector<2x188xf32>
    %118 = arith.mulf %117, %116 : vector<2x188xf32>
    %119 = arith.addf %114, %118 : vector<2x188xf32>
    %120 = arith.addf %23, %47 : vector<2x188xf32>
    %121 = arith.addf %71, %95 : vector<2x188xf32>
    %122 = arith.addf %120, %121 : vector<2x188xf32>
    %123 = arith.addf %122, %119 : vector<2x188xf32>
    %c0_35 = arith.constant 0 : index
    %124 = memref.load %arg2[%c0_35] : memref<1xf32, #tpu.memory_space<smem>>
    %125 = vector.broadcast %124 : f32 to vector<2x188xf32>
    %126 = arith.addf %123, %125 : vector<2x188xf32>
    %c0_36 = arith.constant 0 : index
    %c0_37 = arith.constant 0 : index
    %127 = vector.load %arg4[%c0_36, %c0_37] : memref<2x192xf32, #tpu.memory_space<vmem>>, vector<2x188xf32>
    tpu.vector_store %arg4[%c0_36, %c0_37], %126 {strides = array<i32>} : memref<2x192xf32, #tpu.memory_space<vmem>>, vector<2x188xf32>,
    %cst = arith.constant 0.000000e+00 : f32
    %128 = vector.broadcast %cst : f32 to vector<2x4xf32>
    %c0_38 = arith.constant 0 : index
    %c188 = arith.constant 188 : index
    %129 = vector.load %arg4[%c0_38, %c188] : memref<2x192xf32, #tpu.memory_space<vmem>>, vector<2x4xf32>
    tpu.vector_store %arg4[%c0_38, %c188], %128 {strides = array<i32>} : memref<2x192xf32, #tpu.memory_space<vmem>>, vector<2x4xf32>,
    return
  }
  func.func @transform_0(%arg0: i32) -> i32 {
    %c0_i32 = arith.constant 0 : i32
    %c0_i32_0 = arith.constant 0 : i32
    return %c0_i32 : i32
  }
  func.func @transform_1(%arg0: i32) -> i32 {
    %c0_i32 = arith.constant 0 : i32
    %c0_i32_0 = arith.constant 0 : i32
    return %c0_i32 : i32
  }
  func.func @transform_2(%arg0: i32) -> (i32, i32) {
    %c0_i32 = arith.constant 0 : i32
    %c0_i32_0 = arith.constant 0 : i32
    return %arg0, %c0_i32 : i32, i32
  }
  func.func @transform_3(%arg0: i32) -> (i32, i32) {
    %c0_i32 = arith.constant 0 : i32
    %c0_i32_0 = arith.constant 0 : i32
    return %arg0, %c0_i32 : i32, i32
  }
}

</mosaic_0001>

<llo_original>
// kernel: conv2d_1x1ch_k5.1
$region0: #{conv2d_1x1ch_k5.1}
  #allocation0 [shape = 'u32[]', space=smem, size = 0x4, offset = 0x4, fixed_abs, tag = 'smem constant byte address 0x4 - core index']
  #allocation1 [shape = 'u32[144,128]{1,0:T(1,128)}', space=vmem, size = 0x12000, scoped, tag = 'internal scratch']
  #allocation2 [shape = 'f32[1]{0:T(128)S(6)}', space=smem, size = 0x200, scoped, tag = 'scoped memory for conv2d_1x1ch_k5.1']
  %s0 = inlined_call_operand.vmem [shape: f32[25], index: 0, kind: input, shape index: {}]
  %s1 = inlined_call_operand.<no memory space> [shape: f32[1], index: 1, kind: input, shape index: {}]
  %s2 = inlined_call_operand.vmem [shape: f32[2,256], index: 2, kind: input, shape index: {}]
  %s3 = inlined_call_operand.vmem [shape: f32[2,192], index: 3, kind: output, shape index: {}]
  %s4 = sld [smem:[#allocation0]]
  $region26: #{conv2d_1x1ch_k5.1} parent=0
    _
  %s6 = ssub.s32 1, %s4
  %s7 = scalar_select 0, %s6, %s4
  %8 = sst [smem:[#allocation2]] %s1
  $region1: #{conv2d_1x1ch_k5.1} parent=0
    #allocation3 [shape = 'u8[512]{0}', space=smem, size = 0x200, scoped, tag = 'input window, operand 0, single buffered']
    #allocation4 [shape = 's32[1]{0}', space=sflag, size = 0x4, scoped, tag = 'scoped memory for conv2d_1x1ch_k5.1']
    %9 = vsyncpa [#allocation4], 0
    // Predicated region
    $region2: #{conv2d_1x1ch_k5.1} parent=1 // pred_check
      _
    $region3: #{conv2d_1x1ch_k5.1} parent=1 // pred_check_branch
      %11 = sbr.rel (0) target = $region5
    $region4: #{conv2d_1x1ch_k5.1} parent=1 // pred_region
      %s13 = ssub.s32 16, 16
      %14 = vsyncadd [#allocation4], %s13
      %s16 = sshll.u32 %s0, 4
      %s17 = int_to_ptr.vmem [resolvable:$true] %s16
      %19 = dma.vmem_to_smem %s17, 16, [#allocation3], [#allocation4]
    $region5: #{conv2d_1x1ch_k5.1} parent=1 // pred_fallthru
      _
    // Predicated region
    $region6: #{conv2d_1x1ch_k5.1} parent=1 // pred_check
      _
    $region7: #{conv2d_1x1ch_k5.1} parent=1 // pred_check_branch
      %21 = sbr.rel (0) target = $region9
    $region8: #{conv2d_1x1ch_k5.1} parent=1 // pred_region
      _
    $region9: #{conv2d_1x1ch_k5.1} parent=1 // pred_fallthru
      _
    // Predicated region
    $region10: #{conv2d_1x1ch_k5.1} parent=1 // pred_check
      _
    $region11: #{conv2d_1x1ch_k5.1} parent=1 // pred_check_branch
      %23 = sbr.rel (0) target = $region13
    $region12: #{conv2d_1x1ch_k5.1} parent=1 // pred_region
      _
    $region13: #{conv2d_1x1ch_k5.1} parent=1 // pred_fallthru
      _
    // Predicated region
    $region14: #{conv2d_1x1ch_k5.1} parent=1 // pred_check
      _
    $region15: #{conv2d_1x1ch_k5.1} parent=1 // pred_check_branch
      %25 = sbr.rel (0) target = $region17
    $region16: #{conv2d_1x1ch_k5.1} parent=1 // pred_region
      %26 = dma.done [#allocation4], 16
    $region17: #{conv2d_1x1ch_k5.1} parent=1 // pred_fallthru
      _
    %27 = sfence
    %s28 = sld [smem:[#allocation3]]
    %v29 = vld [vmem:[%s2] sm:$0xf]
    %v30 = vstv %s28
    %v31 = vmul.f32 %v30, %v29
    %s32 = sld [smem:[#allocation3 + $0x1]]
    %v33 = vstv %s32
    %v34 = vmul.f32 %v33, %v29
    %36 = vrot.lane.b32.xlu0 %v34, 127
    %v37 = vpop.permute.xlu0 %36
    %v38 = vrot.slane %v37, 2
    %vm39 = vcmask 1039360
    %v40 = vsel %vm39, %v37, %v38
    %v42 = vadd.f32 %v31, %v40
    %s43 = sld [smem:[#allocation3 + $0x2]]
    %v44 = vstv %s43
    %v45 = vmul.f32 %v44, %v29
    %47 = vrot.lane.b32.xlu0 %v45, 126
    %v48 = vpop.permute.xlu0 %47
    %v49 = vrot.slane %v48, 2
    %vm50 = vcmask 1031168
    %v51 = vsel %vm50, %v48, %v49
    %v53 = vadd.f32 %v42, %v51
    %s54 = sld [smem:[#allocation3 + $0x3]]
    %v55 = vstv %s54
    %v56 = vmul.f32 %v55, %v29
    %58 = vrot.lane.b32.xlu0 %v56, 125
    %v59 = vpop.permute.xlu0 %58
    %v60 = vrot.slane %v59, 2
    %vm61 = vcmask 1022976
    %v62 = vsel %vm61, %v59, %v60
    %v64 = vadd.f32 %v53, %v62
    %s65 = sld [smem:[#allocation3 + $0x4]]
    %v66 = vstv %s65
    %v67 = vmul.f32 %v66, %v29
    %69 = vrot.lane.b32.xlu0 %v67, 124
    %v70 = vpop.permute.xlu0 %69
    %v71 = vrot.slane %v70, 2
    %vm72 = vcmask 1014784
    %v73 = vsel %vm72, %v70, %v71
    %v75 = vadd.f32 %v64, %v73
    %s76 = sld [smem:[#allocation3 + $0x5]]
    %v77 = vstv %s76
    %v78 = vmul.f32 %v77, %v29
    %s79 = sld [smem:[#allocation3 + $0x6]]
    %v80 = vstv %s79
    %v81 = vmul.f32 %v80, %v29
    %83 = vrot.lane.b32.xlu0 %v81, 127
    %v84 = vpop.permute.xlu0 %83
    %v85 = vrot.slane %v84, 2
    %v86 = vsel %vm39, %v84, %v85
    %v88 = vadd.f32 %v78, %v86
    %s89 = sld [smem:[#allocation3 + $0x7]]
    %v90 = vstv %s89
    %v91 = vmul.f32 %v90, %v29
    %93 = vrot.lane.b32.xlu0 %v91, 126
    %v94 = vpop.permute.xlu0 %93
    %v95 = vrot.slane %v94, 2
    %v96 = vsel %vm50, %v94, %v95
    %v98 = vadd.f32 %v88, %v96
    %s99 = sld [smem:[#allocation3 + $0x8]]
    %v100 = vstv %s99
    %v101 = vmul.f32 %v100, %v29
    %103 = vrot.lane.b32.xlu0 %v101, 125
    %v104 = vpop.permute.xlu0 %103
    %v105 = vrot.slane %v104, 2
    %v106 = vsel %vm61, %v104, %v105
    %v108 = vadd.f32 %v98, %v106
    %s109 = sld [smem:[#allocation3 + $0x9]]
    %v110 = vstv %s109
    %v111 = vmul.f32 %v110, %v29
    %113 = vrot.lane.b32.xlu0 %v111, 124
    %v114 = vpop.permute.xlu0 %113
    %v115 = vrot.slane %v114, 2
    %v116 = vsel %vm72, %v114, %v115
    %v118 = vadd.f32 %v108, %v116
    %s119 = sld [smem:[#allocation3 + $0xa]]
    %v120 = vstv %s119
    %v121 = vmul.f32 %v120, %v29
    %s122 = sld [smem:[#allocation3 + $0xb]]
    %v123 = vstv %s122
    %v124 = vmul.f32 %v123, %v29
    %126 = vrot.lane.b32.xlu0 %v124, 127
    %v127 = vpop.permute.xlu0 %126
    %v128 = vrot.slane %v127, 2
    %v129 = vsel %vm39, %v127, %v128
    %v131 = vadd.f32 %v121, %v129
    %s132 = sld [smem:[#allocation3 + $0xc]]
    %v133 = vstv %s132
    %v134 = vmul.f32 %v133, %v29
    %136 = vrot.lane.b32.xlu0 %v134, 126
    %v137 = vpop.permute.xlu0 %136
    %v138 = vrot.slane %v137, 2
    %v139 = vsel %vm50, %v137, %v138
    %v141 = vadd.f32 %v131, %v139
    %s142 = sld [smem:[#allocation3 + $0xd]]
    %v143 = vstv %s142
    %v144 = vmul.f32 %v143, %v29
    %146 = vrot.lane.b32.xlu0 %v144, 125
    %v147 = vpop.permute.xlu0 %146
    %v148 = vrot.slane %v147, 2
    %v149 = vsel %vm61, %v147, %v148
    %v151 = vadd.f32 %v141, %v149
    %s152 = sld [smem:[#allocation3 + $0xe]]
    %v153 = vstv %s152
    %v154 = vmul.f32 %v153, %v29
    %156 = vrot.lane.b32.xlu0 %v154, 124
    %v157 = vpop.permute.xlu0 %156
    %v158 = vrot.slane %v157, 2
    %v159 = vsel %vm72, %v157, %v158
    %v161 = vadd.f32 %v151, %v159
    %s162 = sld [smem:[#allocation3 + $0xf]]
    %v163 = vstv %s162
    %v164 = vmul.f32 %v163, %v29
    %s165 = sld [smem:[#allocation3 + $0x10]]
    %v166 = vstv %s165
    %v167 = vmul.f32 %v166, %v29
    %169 = vrot.lane.b32.xlu0 %v167, 127
    %v170 = vpop.permute.xlu0 %169
    %v171 = vrot.slane %v170, 2
    %v172 = vsel %vm39, %v170, %v171
    %v174 = vadd.f32 %v164, %v172
    %s175 = sld [smem:[#allocation3 + $0x11]]
    %v176 = vstv %s175
    %v177 = vmul.f32 %v176, %v29
    %179 = vrot.lane.b32.xlu0 %v177, 126
    %v180 = vpop.permute.xlu0 %179
    %v181 = vrot.slane %v180, 2
    %v182 = vsel %vm50, %v180, %v181
    %v184 = vadd.f32 %v174, %v182
    %s185 = sld [smem:[#allocation3 + $0x12]]
    %v186 = vstv %s185
    %v187 = vmul.f32 %v186, %v29
    %189 = vrot.lane.b32.xlu0 %v187, 125
    %v190 = vpop.permute.xlu0 %189
    %v191 = vrot.slane %v190, 2
    %v192 = vsel %vm61, %v190, %v191
    %v194 = vadd.f32 %v184, %v192
    %s195 = sld [smem:[#allocation3 + $0x13]]
    %v196 = vstv %s195
    %v197 = vmul.f32 %v196, %v29
    %199 = vrot.lane.b32.xlu0 %v197, 124
    %v200 = vpop.permute.xlu0 %199
    %v201 = vrot.slane %v200, 2
    %v202 = vsel %vm72, %v200, %v201
    %v204 = vadd.f32 %v194, %v202
    %s205 = sld [smem:[#allocation3 + $0x14]]
    %v206 = vstv %s205
    %v207 = vmul.f32 %v206, %v29
    %s208 = sld [smem:[#allocation3 + $0x15]]
    %v209 = vstv %s208
    %v210 = vmul.f32 %v209, %v29
    %212 = vrot.lane.b32.xlu0 %v210, 127
    %v213 = vpop.permute.xlu0 %212
    %v214 = vrot.slane %v213, 2
    %v215 = vsel %vm39, %v213, %v214
    %v217 = vadd.f32 %v207, %v215
    %s218 = sld [smem:[#allocation3 + $0x16]]
    %v219 = vstv %s218
    %v220 = vmul.f32 %v219, %v29
    %222 = vrot.lane.b32.xlu0 %v220, 126
    %v223 = vpop.permute.xlu0 %222
    %v224 = vrot.slane %v223, 2
    %v225 = vsel %vm50, %v223, %v224
    %v227 = vadd.f32 %v217, %v225
    %s228 = sld [smem:[#allocation3 + $0x17]]
    %v229 = vstv %s228
    %v230 = vmul.f32 %v229, %v29
    %232 = vrot.lane.b32.xlu0 %v230, 125
    %v233 = vpop.permute.xlu0 %232
    %v234 = vrot.slane %v233, 2
    %v235 = vsel %vm61, %v233, %v234
    %v237 = vadd.f32 %v227, %v235
    %s238 = sld [smem:[#allocation3 + $0x18]]
    %v239 = vstv %s238
    %v240 = vmul.f32 %v239, %v29
    %242 = vrot.lane.b32.xlu0 %v240, 124
    %v243 = vpop.permute.xlu0 %242
    %v244 = vrot.slane %v243, 2
    %v245 = vsel %vm72, %v243, %v244
    %v247 = vadd.f32 %v237, %v245
    %249 = vrot.lane.b32.xlu0 %v118, 112
    %v250 = vpop.permute.xlu0 %249
    %v251 = vrot.slane %v250, 2
    %vm252 = vcmask 916480
    %v253 = vsel %vm252, %v250, %v251
    %v255 = vadd.f32 %v75, %v253
    %257 = vrot.lane.b32.xlu0 %v204, 112
    %v258 = vpop.permute.xlu0 %257
    %v259 = vrot.slane %v258, 2
    %v260 = vsel %vm252, %v258, %v259
    %v262 = vadd.f32 %v161, %v260
    %264 = vrot.lane.b32.xlu0 %v262, 96
    %v265 = vpop.permute.xlu0 %264
    %v266 = vrot.slane %v265, 2
    %vm267 = vcmask 785408
    %v268 = vsel %vm267, %v265, %v266
    %v270 = vadd.f32 %v255, %v268
    %272 = vrot.lane.b32.xlu0 %v247, 64
    %v273 = vpop.permute.xlu0 %272
    %v274 = vrot.slane %v273, 2
    %vm275 = vcmask 523264
    %v276 = vsel %vm275, %v273, %v274
    %v278 = vadd.f32 %v270, %v276
    %s279 = sld [smem:[#allocation2]]
    %v280 = vstv %s279
    %v281 = vadd.f32 %v278, %v280
    %vm282 = vcmask 1041408
    %vm283 = vcmask 486402
    %vm284 = vmor %vm283, %vm282
    %285 = vst.msk [vmem:[%s3] sm:$0xf] %vm284, %v281
    %vm286 = vcmask 517600
    %287 = vst.msk [vmem:[%s3 + $0x2] sm:$0x3] %vm286, 0.0
    // Predicated region
    $region18: #{conv2d_1x1ch_k5.1} parent=1 // pred_check
      _
    $region19: #{conv2d_1x1ch_k5.1} parent=1 // pred_check_branch
      %289 = sbr.rel (0) target = $region21
    $region20: #{conv2d_1x1ch_k5.1} parent=1 // pred_region
      _
    $region21: #{conv2d_1x1ch_k5.1} parent=1 // pred_fallthru
      _
    // Predicated region
    $region22: #{conv2d_1x1ch_k5.1} parent=1 // pred_check
      _
    $region23: #{conv2d_1x1ch_k5.1} parent=1 // pred_check_branch
      %291 = sbr.rel (0) target = $region25
    $region24: #{conv2d_1x1ch_k5.1} parent=1 // pred_region
      _
    $region25: #{conv2d_1x1ch_k5.1} parent=1 // pred_fallthru
      _
    %292 = vsyncpa [#allocation4], 1

</llo_original>
